<compile_context>
chip_gen: v7x
topology: tpu7x:2x2x1
jax: 0.10.0
libtpu: 0.0.40
codegen_flags: <defaults>
</compile_context>

<pallas_src>
import jax
import jax.numpy as jnp
from jax.experimental import pallas as pl
from jax.experimental.pallas import tpu as pltpu


def _add_joint_kernel(enc_ref, wt_ref, dflat_ref, out_ref):
    # enc_ref   : (tile_t, C_enc)       compute dtype (bf16 by default)
    # wt_ref    : (C_enc, tile_u * H)   W_enc replicated tile_u times along lanes
    # dflat_ref : (1, tile_u * H)       f32: dec @ W_dec + b_dec + b_enc (per batch)
    # out_ref   : (tile_t, tile_u * H)  lane-dense output block
    h = jnp.dot(enc_ref[...], wt_ref[...], preferred_element_type=jnp.float32)
    h = h + dflat_ref[...]
    # tanh in the output dtype: bf16 tanh for bf16 outputs (keeps the EUP off
    # the critical path on v6e/v7x), f32 tanh in exact-parity (f32 out) mode.
    out_ref[...] = jnp.tanh(h.astype(out_ref.dtype))


def _vmem_limit_bytes():
    try:
        cap = int(getattr(pltpu.get_tpu_info(), "vmem_capacity_bytes"))
    except Exception:
        cap = 64 * 1024 * 1024
    # ~60% of physical, capped: ~38 MiB on v7x (64 MiB), ~76 MiB on v5e/v6e (128 MiB).
    return int(min(cap * 0.6, 96 * 1024 * 1024))


def _choose_tile_u(U, H, Cenc, compute_itemsize):
    """Largest divisor of U whose lane width is legal (tile_u*H % 128 == 0, or
    full U) and whose double-buffered W_enc tile fits a ~8 MiB budget."""
    budget = 8 * 1024 * 1024
    legal = [d for d in range(1, U + 1)
             if U % d == 0 and (d == U or (d * H) % 128 == 0)]
    fit = [d for d in legal if 2 * Cenc * d * H * compute_itemsize <= budget]
    return max(fit) if fit else min(legal)


def _choose_tile_t(Tp, Cenc, lane_width, compute_itemsize, out_itemsize):
    """Keep the double-buffered per-T-tile blocks (enc in + out) near ~6 MiB,
    multiple of 8 sublanes, capped at 1024 rows, preferring a divisor of Tp."""
    budget = 6 * 1024 * 1024
    per_row = 2 * (Cenc * compute_itemsize + lane_width * out_itemsize)
    tile_t = budget // max(per_row, 1)
    tile_t = max(8, min(1024, (tile_t // 8) * 8))
    if tile_t >= Tp:
        return Tp
    t = tile_t
    while t >= 8 and Tp % t != 0:
        t -= 8
    return t if t >= 8 else tile_t


def add_joint_forward(encoder_out, decoder_state, encoder_padding_mask,
                      w_enc, b_enc, w_dec, b_dec, *, padding_idx, downsample,
                      tile_t=None, tile_u=None,
                      compute_dtype=jnp.bfloat16, out_dtype=jnp.bfloat16):
    """Reproduces AddJointNet.forward.

    encoder_out          : (T, B, C_enc) float32
    decoder_state        : (B, U, C_dec) float32
    encoder_padding_mask : (B, T) bool
    w_enc (C_enc, H), b_enc (H,), w_dec (C_dec, H), b_dec (H,)
    Returns (h_joint (B, T', U, H), fake_src_lengths (B,) int32).
    Pass compute_dtype=out_dtype=jnp.float32 for bit-parity with the f32 module.
    """
    compute_dtype = jnp.dtype(compute_dtype)
    out_dtype = jnp.dtype(out_dtype)

    # --- XLA glue: strided downsample + (T',B,C) -> (B,T',C), emitted directly
    #     in the compute dtype so the kernel-side encoder read is halved.
    enc = jnp.transpose(encoder_out[::downsample], (1, 0, 2)).astype(compute_dtype)

    B, Tp, Cenc = enc.shape
    _, U, Cdec = decoder_state.shape
    H = w_enc.shape[1]
    UH = U * H

    # W_enc tiled along output lanes: column u*H + h == w_enc[:, h].  Keeps the
    # output lane-dense (last dim U*H) with no in-kernel relayout.
    wt = jnp.tile(w_enc, (1, U)).astype(compute_dtype)            # (C_enc, U*H)

    # Decoder projection + both biases folded, flattened per batch (tiny, done
    # once in f32 so the bias/decoder term adds into the f32 accumulator).
    dflat = (jnp.einsum('buc,ch->buh', decoder_state, w_dec,
                        preferred_element_type=jnp.float32)
             + b_dec[None, None, :] + b_enc[None, None, :])       # (B, U, H)
    dflat = dflat.reshape(B, 1, UH).astype(jnp.float32)           # (B, 1, U*H)

    # --- tiling ---
    if tile_u is None:
        tile_u = _choose_tile_u(U, H, Cenc, compute_dtype.itemsize)
    UHt = tile_u * H
    if tile_t is None:
        tile_t = _choose_tile_t(Tp, Cenc, UHt,
                                compute_dtype.itemsize, out_dtype.itemsize)
    tile_t = min(tile_t, Tp)

    nt = pl.cdiv(Tp, tile_t)
    nu = U // tile_u
    grid = (nt, B, nu)   # T'-tiles outermost: best megacore sharding on v7x.

    out_flat = pl.pallas_call(
        _add_joint_kernel,
        out_shape=jax.ShapeDtypeStruct((B, Tp, UH), out_dtype),
        grid_spec=pltpu.PrefetchScalarGridSpec(
            num_scalar_prefetch=0,
            grid=grid,
            in_specs=[
                pl.BlockSpec((pl.Squeezed(), tile_t, Cenc),
                             lambda t, b, u: (b, t, 0)),
                pl.BlockSpec((Cenc, UHt),
                             lambda t, b, u: (0, u)),
                pl.BlockSpec((pl.Squeezed(), 1, UHt),
                             lambda t, b, u: (b, 0, u)),
            ],
            out_specs=pl.BlockSpec((pl.Squeezed(), tile_t, UHt),
                                   lambda t, b, u: (b, t, u)),
        ),
        compiler_params=pltpu.CompilerParams(
            dimension_semantics=("parallel", "parallel", "parallel"),
            vmem_limit_bytes=_vmem_limit_bytes()),
    )(enc, wt, dflat)

    h_joint = out_flat.reshape(B, Tp, U, H)   # free reshape (row-major identical)

    # --- XLA glue: fake_src_lengths (scalar per-batch reduction) ---
    # NOTE: mirrors fairseq's `mask.long().ne(padding_idx)` trick; only
    # meaningful for padding_idx == 1 (mask values are 0/1), same as original.
    fake_src_tokens = encoder_padding_mask.astype(jnp.int32)
    fake_src_lengths = jnp.sum(fake_src_tokens != padding_idx, axis=-1)
    fake_src_lengths = jnp.ceil(
        fake_src_lengths.astype(jnp.float32) / downsample).astype(jnp.int32)
    return h_joint, fake_src_lengths


def _reference(encoder_out, decoder_state, w_enc, b_enc, w_dec, b_dec, downsample):
    enc = jnp.transpose(encoder_out[::downsample], (1, 0, 2))
    h_enc = enc @ w_enc + b_enc
    h_dec = decoder_state @ w_dec + b_dec
    return jnp.tanh(h_enc[:, :, None, :] + h_dec[:, None, :, :])


if __name__ == "__main__":
    # Small shapes consistent with the module's forward.
    T, B, U = 16, 2, 8
    ENC_DIM, DEC_DIM, HID = 32, 48, 32     # U*HID = 256, a multiple of 128
    DOWNSAMPLE = 2
    PADDING_IDX = 1

    key = jax.random.PRNGKey(0)
    k1, k2, k3, k4, k5, k6, k7 = jax.random.split(key, 7)

    encoder_out = jax.random.normal(k1, (T, B, ENC_DIM), dtype=jnp.float32)
    decoder_state = jax.random.normal(k2, (B, U, DEC_DIM), dtype=jnp.float32)
    # padding mask: True where padding (fairseq convention)
    encoder_padding_mask = jax.random.bernoulli(k3, p=0.25, shape=(B, T))

    # nn.Linear weights stored transposed as (in, out) so kernels compute x @ W.
    w_enc = (jax.random.normal(k4, (ENC_DIM, HID), dtype=jnp.float32)
             / jnp.sqrt(ENC_DIM))
    b_enc = jax.random.normal(k5, (HID,), dtype=jnp.float32) * 0.01
    w_dec = (jax.random.normal(k6, (DEC_DIM, HID), dtype=jnp.float32)
             / jnp.sqrt(DEC_DIM))
    b_dec = jax.random.normal(k7, (HID,), dtype=jnp.float32) * 0.01

    h_joint, fake_src_lengths = add_joint_forward(
        encoder_out, decoder_state, encoder_padding_mask,
        w_enc, b_enc, w_dec, b_dec,
        padding_idx=PADDING_IDX, downsample=DOWNSAMPLE)
    jax.block_until_ready(h_joint)
    jax.block_until_ready(fake_src_lengths)

    # Correctness check against plain-JAX f32 reference (bf16 kernel tolerance).
    ref = _reference(encoder_out, decoder_state, w_enc, b_enc, w_dec, b_dec,
                     DOWNSAMPLE)
    ref_len = jnp.ceil(
        jnp.sum(encoder_padding_mask.astype(jnp.int32) != PADDING_IDX, axis=-1)
        .astype(jnp.float32) / DOWNSAMPLE).astype(jnp.int32)

    assert h_joint.shape == (B, T // DOWNSAMPLE, U, HID)
    assert h_joint.dtype == jnp.bfloat16
    assert fake_src_lengths.shape == (B,)
    assert jnp.allclose(h_joint.astype(jnp.float32), ref, atol=3e-2, rtol=3e-2)
    assert jnp.array_equal(fake_src_lengths, ref_len)

    print("KERNEL_OK")
</pallas_src>

<mosaic_0001>
module attributes {stable_mosaic.version = 11 : i64} {
  func.func @_add_joint_kernel(%arg0: i32, %arg1: i32, %arg2: i32, %arg3: memref<1x8x32xbf16, #tpu.memory_space<vmem>>, %arg4: memref<32x256xbf16, #tpu.memory_space<vmem>>, %arg5: memref<1x1x256xf32, #tpu.memory_space<vmem>>, %arg6: memref<1x8x256xbf16, #tpu.memory_space<vmem>>) attributes {dimension_semantics = [#tpu.dimension_semantics<parallel>, #tpu.dimension_semantics<parallel>, #tpu.dimension_semantics<parallel>], iteration_bounds = array<i64: 1, 2, 1>, scalar_prefetch = 0 : i64, scratch_operands = 0 : i64, tpu.core_type = #tpu.core_type<tc>, window_params = [{transform_indices = @transform_0, window_bounds = array<i64: 1, 8, 32>}, {transform_indices = @transform_1, window_bounds = array<i64: 32, 256>}, {transform_indices = @transform_2, window_bounds = array<i64: 1, 1, 256>}, {transform_indices = @transform_3, window_bounds = array<i64: 1, 8, 256>}]} {
    %c0 = arith.constant 0 : index
    %c0_0 = arith.constant 0 : index
    %c0_1 = arith.constant 0 : index
    %0 = vector.load %arg3[%c0, %c0_0, %c0_1] : memref<1x8x32xbf16, #tpu.memory_space<vmem>>, vector<1x8x32xbf16>
    %1 = vector.shape_cast %0 : vector<1x8x32xbf16> to vector<8x32xbf16>
    %c0_2 = arith.constant 0 : index
    %c0_3 = arith.constant 0 : index
    %2 = vector.load %arg4[%c0_2, %c0_3] : memref<32x256xbf16, #tpu.memory_space<vmem>>, vector<32x256xbf16>
    %cst = arith.constant dense<0.000000e+00> : vector<8x256xf32>
    %3 = tpu.matmul %1, %2, %cst {dimension_numbers = #tpu.dot_dimension_numbers<[1], [0], [0], [1], [0, 0, 1, 1], [], []>} : vector<8x32xbf16>, vector<32x256xbf16>, vector<8x256xf32> -> vector<8x256xf32>
    %c0_4 = arith.constant 0 : index
    %c0_5 = arith.constant 0 : index
    %c0_6 = arith.constant 0 : index
    %4 = vector.load %arg5[%c0_4, %c0_5, %c0_6] : memref<1x1x256xf32, #tpu.memory_space<vmem>>, vector<1x1x256xf32>
    %5 = vector.shape_cast %4 : vector<1x1x256xf32> to vector<1x256xf32>
    %6 = vector.broadcast %5 : vector<1x256xf32> to vector<8x256xf32>
    %7 = arith.addf %3, %6 : vector<8x256xf32>
    %8 = arith.truncf %7 : vector<8x256xf32> to vector<8x256xbf16>
    %9 = math.tanh %8 : vector<8x256xbf16>
    %c0_7 = arith.constant 0 : index
    %c0_8 = arith.constant 0 : index
    %c0_9 = arith.constant 0 : index
    %10 = vector.load %arg6[%c0_7, %c0_8, %c0_9] : memref<1x8x256xbf16, #tpu.memory_space<vmem>>, vector<1x8x256xbf16>
    %11 = vector.shape_cast %10 : vector<1x8x256xbf16> to vector<8x256xbf16>
    %12 = vector.shape_cast %9 : vector<8x256xbf16> to vector<1x8x256xbf16>
    tpu.vector_store %arg6[%c0_7, %c0_8, %c0_9], %12 {strides = array<i32>} : memref<1x8x256xbf16, #tpu.memory_space<vmem>>, vector<1x8x256xbf16>,
    return
  }
  func.func @transform_0(%arg0: i32, %arg1: i32, %arg2: i32) -> (i32, i32, i32) {
    %c0_i32 = arith.constant 0 : i32
    %c0_i32_0 = arith.constant 0 : i32
    return %arg1, %arg0, %c0_i32 : i32, i32, i32
  }
  func.func @transform_1(%arg0: i32, %arg1: i32, %arg2: i32) -> (i32, i32) {
    %c0_i32 = arith.constant 0 : i32
    %c0_i32_0 = arith.constant 0 : i32
    return %c0_i32, %arg2 : i32, i32
  }
  func.func @transform_2(%arg0: i32, %arg1: i32, %arg2: i32) -> (i32, i32, i32) {
    %c0_i32 = arith.constant 0 : i32
    %c0_i32_0 = arith.constant 0 : i32
    return %arg1, %c0_i32, %arg2 : i32, i32, i32
  }
  func.func @transform_3(%arg0: i32, %arg1: i32, %arg2: i32) -> (i32, i32, i32) {
    %c0_i32 = arith.constant 0 : i32
    return %arg1, %arg0, %arg2 : i32, i32, i32
  }
}

</mosaic_0001>

<llo_original>
// kernel: tpu_custom_call.1
$region0: #{tpu_custom_call.1}
  #allocation0 [shape = 'u32[]', space=smem, size = 0x4, offset = 0x4, fixed_abs, tag = 'smem constant byte address 0x4 - core index']
  #allocation1 [shape = 'u32[144,128]{1,0:T(1,128)}', space=vmem, size = 0x12000, scoped, tag = 'internal scratch']
  %s0 = inlined_call_operand.hbm [shape: bf16[2,8,32], index: 0, kind: input, shape index: {}]
  %s1 = inlined_call_operand.hbm [shape: bf16[32,256], index: 1, kind: input, shape index: {}]
  %s2 = inlined_call_operand.vmem [shape: f32[2,1,256], index: 2, kind: input, shape index: {}]
  %s3 = inlined_call_operand.hbm [shape: bf16[2,8,256], index: 3, kind: output, shape index: {}]
  %s4 = sld [smem:[#allocation0]]
  $region53: #{tpu_custom_call.1} parent=0
    _
  %s6 = ssub.s32 1, %s4
  %s7 = scalar_select 0, %s6, %s4
  $region1: #{tpu_custom_call.1} parent=0
    #allocation2 [shape = 'u8[4096]{0}', space=vmem, size = 0x1000, scoped, tag = 'input window, operand 0']
    #allocation3 [shape = 's32[2]{0}', space=sflag, size = 0x8, scoped, tag = 'scoped memory for tpu_custom_call.1']
    #allocation4 [shape = 's32[2]{0}', space=sflag, size = 0x8, scoped, tag = 'scoped memory for tpu_custom_call.1']
    #allocation5 [shape = 'u8[16384]{0}', space=vmem, size = 0x4000, scoped, tag = 'input window, operand 1, single buffered']
    #allocation6 [shape = 's32[1]{0}', space=sflag, size = 0x4, scoped, tag = 'scoped memory for tpu_custom_call.1']
    #allocation7 [shape = 'u8[8192]{0}', space=vmem, size = 0x2000, scoped, tag = 'output window, operand 0']
    %8 = vsyncpa [#allocation3], 0
    %s9 = scalar_lea.sflag [#allocation3], 1
    %10 = vsyncpa %s9, 0
    %11 = vsyncpa [#allocation6], 0
    %12 = vsyncpa [#allocation4], 0
    %s13 = scalar_lea.sflag [#allocation4], 1
    %14 = vsyncpa %s13, 0
    loop: start=0, step=1, limit=4
    $region2: #{tpu_custom_call.1} parent=1 // loop_pre_header
      _
    $region3: #{tpu_custom_call.1} parent=1 // loop_header
      %s16 = sphi 0, %s20
      %p17 = scmp.ge.s32.totalorder %s16, 4
      %s23 = sphi 0, %s42
      %s24 = sphi 0, %s38
      %s25 = sphi 0, %s34
      %s26 = sphi 0, %s23
      %s27 = sphi 0, %s24
      %s28 = sphi 0, %s25
      %s29 = sphi 0, %s26
      %s30 = sphi 0, %s27
      %s31 = sphi 0, %s28
      %s47 = sphi 0, %s49
      %s50 = sphi 0, %s47
      %s51 = sphi 0, %s50
      %s67 = sphi 0, %s51
      %s73 = sphi 0, %s75
      %s76 = sphi 0, %s73
      %s77 = sphi 0, %s76
      %s93 = sphi 0, %s77
      %s101 = sphi 0, %s103
      %s104 = sphi 0, %s101
      %s105 = sphi 0, %s104
      %s121 = sphi 0, %s105
      %s131 = sphi 0, %s133
      %s134 = sphi 0, %s131
      %s135 = sphi 0, %s134
      %s151 = sphi 0, %s135
    $region4: #{tpu_custom_call.1} parent=1 // loop_header_branch
      %19 = sbr.rel (%p17) target = $region8
    $region5: #{tpu_custom_call.1} parent=1 // loop_body
      %s21 = ssub.s32 %s16, 1
      %s22 = ssub.s32 %s16, 2
      %s32 = sadd.s32 1, %s25
      %p33 = scmp.ge.s32.totalorder %s32, 1
      %s34 = scalar_select %p33, 0, %s32
      %s35 = sadd.s32 1, %s24
      %s36 = scalar_select %p33, %s35, %s24
      %p37 = scmp.ge.s32.totalorder %s36, 2
      %s38 = scalar_select %p37, 0, %s36
      %s39 = sadd.s32 1, %s23
      %s40 = scalar_select %p37, %s39, %s23
      %p41 = scmp.ge.s32.totalorder %s40, 1
      %s42 = scalar_select %p41, 0, %s40
      %s43 = ssub.s32 %s24, %s38
      %s44 = ssub.s32 %s23, %s42
      %s45 = sor.u32 %s43, %s44
      %p46 = scmp.eq.s32.totalorder %s45, 0
      %s48 = sadd.s32 %s47, 1
      %s49 = scalar_select %p46, %s47, %s48
      %p52 = pneg %p46
      %p53 = scmp.eq.s32.totalorder %s16, 1
      %p54 = por %p52, %p53
      %p55 = scmp.ne.s32.totalorder %s47, %s50
      %p56 = scmp.eq.s32.totalorder %s16, 0
      %p57 = por %p55, %p56
      %p58 = scmp.ne.s32.totalorder %s47, %s50
      %p59 = scmp.eq.s32.totalorder %s21, 1
      %p60 = por %p58, %p59
      %p61 = scmp.ne.s32.totalorder %s50, %s51
      %p62 = scmp.eq.s32.totalorder %s21, 0
      %p63 = por %p61, %p62
      %p64 = scmp.ne.s32.totalorder %s50, %s51
      %p65 = scmp.eq.s32.totalorder %s22, 1
      %p66 = por %p64, %p65
      %p68 = scmp.ne.s32.totalorder %s51, %s67
      %p69 = scmp.eq.s32.totalorder %s22, 0
      %p70 = por %p68, %p69
      %s71 = ssub.s32 %s25, %s34
      %p72 = scmp.eq.s32.totalorder %s71, 0
      %s74 = sadd.s32 %s73, 1
      %s75 = scalar_select %p72, %s73, %s74
      %p78 = pneg %p72
      %p79 = scmp.eq.s32.totalorder %s16, 1
      %p80 = por %p78, %p79
      %p81 = scmp.ne.s32.totalorder %s73, %s76
      %p82 = scmp.eq.s32.totalorder %s16, 0
      %p83 = por %p81, %p82
      %p84 = scmp.ne.s32.totalorder %s73, %s76
      %p85 = scmp.eq.s32.totalorder %s21, 1
      %p86 = por %p84, %p85
      %p87 = scmp.ne.s32.totalorder %s76, %s77
      %p88 = scmp.eq.s32.totalorder %s21, 0
      %p89 = por %p87, %p88
      %p90 = scmp.ne.s32.totalorder %s76, %s77
      %p91 = scmp.eq.s32.totalorder %s22, 1
      %p92 = por %p90, %p91
      %p94 = scmp.ne.s32.totalorder %s77, %s93
      %p95 = scmp.eq.s32.totalorder %s22, 0
      %p96 = por %p94, %p95
      %s97 = ssub.s32 %s24, %s38
      %s98 = ssub.s32 %s25, %s34
      %s99 = sor.u32 %s97, %s98
      %p100 = scmp.eq.s32.totalorder %s99, 0
      %s102 = sadd.s32 %s101, 1
      %s103 = scalar_select %p100, %s101, %s102
      %p106 = pneg %p100
      %p107 = scmp.eq.s32.totalorder %s16, 1
      %p108 = por %p106, %p107
      %p109 = scmp.ne.s32.totalorder %s101, %s104
      %p110 = scmp.eq.s32.totalorder %s16, 0
      %p111 = por %p109, %p110
      %p112 = scmp.ne.s32.totalorder %s101, %s104
      %p113 = scmp.eq.s32.totalorder %s21, 1
      %p114 = por %p112, %p113
      %p115 = scmp.ne.s32.totalorder %s104, %s105
      %p116 = scmp.eq.s32.totalorder %s21, 0
      %p117 = por %p115, %p116
      %p118 = scmp.ne.s32.totalorder %s104, %s105
      %p119 = scmp.eq.s32.totalorder %s22, 1
      %p120 = por %p118, %p119
      %p122 = scmp.ne.s32.totalorder %s105, %s121
      %p123 = scmp.eq.s32.totalorder %s22, 0
      %p124 = por %p122, %p123
      %s125 = ssub.s32 %s24, %s38
      %s126 = ssub.s32 %s23, %s42
      %s127 = sor.u32 %s125, %s126
      %s128 = ssub.s32 %s25, %s34
      %s129 = sor.u32 %s127, %s128
      %p130 = scmp.eq.s32.totalorder %s129, 0
      %s132 = sadd.s32 %s131, 1
      %s133 = scalar_select %p130, %s131, %s132
      %p136 = pneg %p130
      %p137 = scmp.eq.s32.totalorder %s16, 1
      %p138 = por %p136, %p137
      %p139 = scmp.ne.s32.totalorder %s131, %s134
      %p140 = scmp.eq.s32.totalorder %s16, 0
      %p141 = por %p139, %p140
      %p142 = scmp.ne.s32.totalorder %s131, %s134
      %p143 = scmp.eq.s32.totalorder %s21, 1
      %p144 = por %p142, %p143
      %p145 = scmp.ne.s32.totalorder %s134, %s135
      %p146 = scmp.eq.s32.totalorder %s21, 0
      %p147 = por %p145, %p146
      %p148 = scmp.ne.s32.totalorder %s134, %s135
      %p149 = scmp.eq.s32.totalorder %s22, 1
      %p150 = por %p148, %p149
      %p152 = scmp.ne.s32.totalorder %s135, %s151
      %p153 = scmp.eq.s32.totalorder %s22, 0
      %p154 = por %p152, %p153
      %p155 = scmp.le.s32.totalorder 1, %s16
      %p156 = scmp.lt.s32.totalorder %s16, 3
      %p157 = pnand %p155, %p156
      %p158 = pneg %p157
      // Predicated region
      $region9: #{tpu_custom_call.1} parent=5 // pred_check
        _
      $region10: #{tpu_custom_call.1} parent=5 // pred_check_branch
        %160 = sbr.rel (%p157) target = $region12
      $region11: #{tpu_custom_call.1} parent=5 // pred_region
        %s161 = ssub.s32 %s16, 1
        // Predicated region
        $region13: #{tpu_custom_call.1} parent=11 // pred_check
          %p162 = pneg %p89
        $region14: #{tpu_custom_call.1} parent=11 // pred_check_branch
          %164 = sbr.rel (%p162) target = $region16
        $region15: #{tpu_custom_call.1} parent=11 // pred_region
          %s165 = smul.u32 2, %s28
          %s167 = ssub.s32 512, 512
          %168 = vsyncadd [#allocation6], %s167
          %s169 = smul.addr %s165, 64
          %s170 = scalar_lea.hbm %s1, %s169
          %s171 = sshll.u32 [#allocation5], 4
          %s172 = int_to_ptr.vmem [resolvable:$true] %s171
          %177 = dma.hbm_to_vmem [thread:$0]  %s170, 512, %s172, [#allocation6], 128, 128, 8
        $region16: #{tpu_custom_call.1} parent=11 // pred_fallthru
          _
      $region12: #{tpu_custom_call.1} parent=5 // pred_fallthru
        _
      %p178 = scmp.lt.s32.totalorder %s16, 2
      // Predicated region
      $region17: #{tpu_custom_call.1} parent=5 // pred_check
        %p179 = pneg %p178
      $region18: #{tpu_custom_call.1} parent=5 // pred_check_branch
        %181 = sbr.rel (%p179) target = $region20
      $region19: #{tpu_custom_call.1} parent=5 // pred_region
        // Predicated region
        $region21: #{tpu_custom_call.1} parent=19 // pred_check
          %p182 = pneg %p57
        $region22: #{tpu_custom_call.1} parent=19 // pred_check_branch
          %184 = sbr.rel (%p182) target = $region24
        $region23: #{tpu_custom_call.1} parent=19 // pred_region
          %s185 = sand.u32 %s47, 1
          %s186 = scalar_lea.sflag [#allocation3], %s185
          %s187 = sand.u32 %s47, 1
          %s188 = smul.addr %s187, 4
          %s189 = scalar_lea.vmem [#allocation2], %s188
          %s191 = ssub.s32 64, 64
          %192 = vsyncadd %s186, %s191
          %s193 = sadd.s32 %s23, %s24
          %s194 = smul.addr %s193, 64
          %s195 = scalar_lea.hbm %s0, %s194
          %s197 = sshll.u32 %s189, 4
          %s198 = int_to_ptr.vmem [resolvable:$true] %s197
          %200 = dma.hbm_to_vmem [thread:$0]  %s195, 64, %s198, %s186
        $region24: #{tpu_custom_call.1} parent=19 // pred_fallthru
          _
        // Predicated region
        $region25: #{tpu_custom_call.1} parent=19 // pred_check
          %p201 = pneg %p111
        $region26: #{tpu_custom_call.1} parent=19 // pred_check_branch
          %203 = sbr.rel (%p201) target = $region28
        $region27: #{tpu_custom_call.1} parent=19 // pred_region
          %s204 = smul.u32 2, %s25
          %p205 = scmp.lt.s32.totalorder %s24, 1
          %s206 = scalar_select %p205, %s24, 1
          %p207 = scmp.lt.s32.totalorder %s204, 1
          %s208 = scalar_select %p207, %s204, 1
          %s209 = smul.addr %s206, 2
          %s210 = sadd.s32 %s208, %s209
          %s211 = scalar_lea.vmem %s2, %s210
          %s212 = smul.u32 2, %s25
        $region28: #{tpu_custom_call.1} parent=19 // pred_fallthru
          _
      $region20: #{tpu_custom_call.1} parent=5 // pred_fallthru
        _
      %p213 = scmp.le.s32.totalorder 1, %s16
      %p214 = scmp.lt.s32.totalorder %s16, 3
      %p215 = pnand %p213, %p214
      %p216 = pneg %p215
      // Predicated region
      $region29: #{tpu_custom_call.1} parent=5 // pred_check
        _
      $region30: #{tpu_custom_call.1} parent=5 // pred_check_branch
        %218 = sbr.rel (%p215) target = $region32
      $region31: #{tpu_custom_call.1} parent=5 // pred_region
        %s219 = ssub.s32 %s16, 1
        %s220 = sand.u32 %s50, 1
        %s221 = scalar_lea.sflag [#allocation3], %s220
        %s222 = sand.u32 %s50, 1
        %s223 = smul.addr %s222, 4
        %s224 = scalar_lea.vmem [#allocation2], %s223
        // Predicated region
        $region33: #{tpu_custom_call.1} parent=31 // pred_check
          %p225 = pneg %p63
        $region34: #{tpu_custom_call.1} parent=31 // pred_check_branch
          %227 = sbr.rel (%p225) target = $region36
        $region35: #{tpu_custom_call.1} parent=31 // pred_region
          %228 = dma.done %s221, 64
        $region36: #{tpu_custom_call.1} parent=31 // pred_fallthru
          _
        // Predicated region
        $region37: #{tpu_custom_call.1} parent=31 // pred_check
          %p229 = pneg %p89
        $region38: #{tpu_custom_call.1} parent=31 // pred_check_branch
          %231 = sbr.rel (%p229) target = $region40
        $region39: #{tpu_custom_call.1} parent=31 // pred_region
          %232 = dma.done [#allocation6], 512
        $region40: #{tpu_custom_call.1} parent=31 // pred_fallthru
          _
        %s233 = sand.u32 %s50, 1
        %s234 = scalar_lea.sflag [#allocation3], %s233
        %s235 = sand.u32 %s50, 1
        %s236 = smul.addr %s235, 4
        %s237 = scalar_lea.vmem [#allocation2], %s236
        %p238 = pneg %p63
        %p239 = pneg %p60
        %p240 = pneg %p89
        %p241 = pneg %p86
        %s242 = smul.u32 2, %s28
        %p243 = scmp.lt.s32.totalorder %s27, 1
        %s244 = scalar_select %p243, %s27, 1
        %p245 = scmp.lt.s32.totalorder %s242, 1
        %s246 = scalar_select %p245, %s242, 1
        %s247 = smul.addr %s244, 2
        %s248 = sadd.s32 %s246, %s247
        %s249 = scalar_lea.vmem %s2, %s248
        %p250 = pneg %p117
        %p251 = pneg %p114
        %p252 = pneg %p147
        %p253 = pneg %p144
        %s254 = sand.u32 %s134, 1
        %s255 = scalar_lea.sflag [#allocation4], %s254
        %s256 = sand.u32 %s134, 1
        %s257 = smul.addr %s256, 8
        %s258 = scalar_lea.vmem [#allocation7], %s257
        %s259 = smul.u32 2, %s28
        %s260 = smul.u32 2, %s28
        %p261 = scmp.lt.s32.totalorder %s27, 1
        %s262 = scalar_select %p261, %s27, 1
        %p263 = scmp.lt.s32.totalorder %s260, 1
        %s264 = scalar_select %p263, %s260, 1
        %s265 = smul.addr %s262, 2
        %s266 = sadd.s32 %s264, %s265
        %s267 = scalar_lea.vmem %s2, %s266
        %s268 = smul.u32 2, %s28
        %s269 = smul.u32 2, %s28
        %v271 = vld [vmem:[%s224] sm:$0xf]
        %v272 = vld [vmem:[#allocation5] sm:$0xff]
        %v273 = vld [vmem:[#allocation5 + $0x8] sm:$0xff]
        %v274 = vld [vmem:[#allocation5 + $0x10] sm:$0xff]
        %v275 = vld [vmem:[#allocation5 + $0x18] sm:$0xff]
        %v276 = vld [vmem:[%s267] sm:$0x3]
        %v278 = vlaneseq
        %v279 = vshrl.u32 %v278, 7
        %v280 = vsub.s32 0, %v279
        %v281 = vrot.slane %v276, %v280
        %v282 = vlaneseq
        %v283 = vshrl.u32 %v282, 7
        %v284 = vsub.s32 1, %v283
        %v285 = vrot.slane %v276, %v284
        %v292 = vunpack.c.l.b16 %v272
        %v293 = vunpack.c.h.b16 %v272
        %v294 = vunpack.c.l.b16 %v273
        %v295 = vunpack.c.h.b16 %v273
        %v296 = vunpack.c.l.b16 %v274
        %v297 = vunpack.c.h.b16 %v274
        %v298 = vunpack.c.l.b16 %v275
        %v299 = vunpack.c.h.b16 %v275
        %v300 = vpack.c.b16 %v294, %v292
        %v301 = vpack.c.b16 %v295, %v293
        %v302 = vpack.c.b16 %v298, %v296
        %v303 = vpack.c.b16 %v299, %v297
        %vm308 = vcmask 261120
        %v310 = vsel %vm308, %v271, 0
        %312 = vmatprep.subr.bf16.mxu0 %v301
        %313 = vmatpush1.bf16.msra.mxu0 %v300
        %314 = vmatprep.subr.bf16.mxu0 %v303
        %315 = vmatpush1.bf16.msra.mxu0 %v302
        %316 = vmatprep.subr.bf16.mxu0 0
        %317 = vmatpush1.bf16.msra.mxu0 0
        %318 = vmatprep.subr.bf16.mxu0 0
        %319 = vmatpush1.bf16.msra.mxu0 0
        %320 = vmatprep.subr.bf16.mxu0 0
        %321 = vmatpush1.bf16.msra.mxu0 0
        %322 = vmatprep.subr.bf16.mxu0 0
        %323 = vmatpush1.bf16.msra.mxu0 0
        %324 = vmatprep.subr.bf16.mxu0 0
        %325 = vmatpush1.bf16.msra.mxu0 0
        %326 = vmatprep.subr.bf16.mxu0 0
        %327 = vmatpush1.bf16.msra.mxu0 0
        %328 = vmatprep.subr.bf16.mxu0 0
        %329 = vmatpush1.bf16.msra.mxu0 0
        %330 = vmatprep.subr.bf16.mxu0 0
        %331 = vmatpush1.bf16.msra.mxu0 0
        %332 = vmatprep.subr.bf16.mxu0 0
        %333 = vmatpush1.bf16.msra.mxu0 0
        %334 = vmatprep.subr.bf16.mxu0 0
        %335 = vmatpush1.bf16.msra.mxu0 0
        %336 = vmatprep.subr.bf16.mxu0 0
        %337 = vmatpush1.bf16.msra.mxu0 0
        %338 = vmatprep.subr.bf16.mxu0 0
        %339 = vmatpush1.bf16.msra.mxu0 0
        %340 = vmatprep.subr.bf16.mxu0 0
        %341 = vmatpush1.bf16.msra.mxu0 0
        %342 = vmatprep.subr.bf16.mxu0 0
        %343 = vmatpush1.bf16.msra.mxu0 0
        %344 = vmatprep.mubr.bf16.mxu0 0
        %345 = vmatmul.mubr.bf16.gmra.mrb[0].mxu0 %v310
        %v346 = vpop.f32.mrb[0].mxu0
        %v347 = vadd.f32 %v281, %v346
        %v348 = vpop.f32.mrb[0].mxu0
        %v349 = vadd.f32 %v285, %v348
        %v350 = vpop.f32.mrb[0].mxu0
        %v351 = vpop.f32.mrb[0].mxu0
        %352 = vdwg.mxu0
        %v353 = vpack.c.bf16 %v347, %v347
        %v354 = vpack.c.bf16 %v349, %v349
        %v355 = vtanh.bf16.pop %v353
        %v356 = vtanh.bf16.pop %v354
        %v359 = vunpack.c.l.b16 %v355
        %v360 = vunpack.c.l.b16 %v356
        %v361 = vpack.c.b16 %v360, %v359
        %363 = vst [vmem:[%s258] sm:$0xff] %v361
        %s364 = sand.u32 %s134, 1
        %s365 = scalar_lea.sflag [#allocation4], %s364
        %s366 = sand.u32 %s134, 1
        %s367 = smul.addr %s366, 8
        %s368 = scalar_lea.vmem [#allocation7], %s367
        // Predicated region
        $region41: #{tpu_custom_call.1} parent=31 // pred_check
          %p369 = pneg %p144
        $region42: #{tpu_custom_call.1} parent=31 // pred_check_branch
          %371 = sbr.rel (%p369) target = $region44
        $region43: #{tpu_custom_call.1} parent=31 // pred_region
          %s372 = smul.u32 2, %s28
          %s374 = ssub.s32 128, 128
          %375 = vsyncadd %s365, %s374
          %s376 = smul.addr %s26, 2
          %s377 = sadd.s32 %s372, %s376
          %s378 = smul.addr %s27, 2
          %s379 = sadd.s32 %s377, %s378
          %s380 = smul.addr %s379, 64
          %s381 = scalar_lea.hbm %s3, %s380
          %s383 = sshll.u32 %s368, 4
          %s384 = int_to_ptr.vmem [resolvable:$true] %s383
          %386 = dma.vmem_to_hbm [thread:$0]  %s384, 128, %s381, %s365
        $region44: #{tpu_custom_call.1} parent=31 // pred_fallthru
          _
      $region32: #{tpu_custom_call.1} parent=5 // pred_fallthru
        _
      %p387 = scmp.le.s32.totalorder 2, %s16
      // Predicated region
      $region45: #{tpu_custom_call.1} parent=5 // pred_check
        %p388 = pneg %p387
      $region46: #{tpu_custom_call.1} parent=5 // pred_check_branch
        %390 = sbr.rel (%p388) target = $region48
      $region47: #{tpu_custom_call.1} parent=5 // pred_region
        %s391 = ssub.s32 %s16, 2
        // Predicated region
        $region49: #{tpu_custom_call.1} parent=47 // pred_check
          %p392 = pneg %p150
        $region50: #{tpu_custom_call.1} parent=47 // pred_check_branch
          %394 = sbr.rel (%p392) target = $region52
        $region51: #{tpu_custom_call.1} parent=47 // pred_region
          %s395 = sand.u32 %s135, 1
          %s396 = scalar_lea.sflag [#allocation4], %s395
          %s397 = sand.u32 %s135, 1
          %s398 = smul.addr %s397, 8
          %s399 = scalar_lea.vmem [#allocation7], %s398
          %400 = dma.done %s396, 128
        $region52: #{tpu_custom_call.1} parent=47 // pred_fallthru
          _
      $region48: #{tpu_custom_call.1} parent=5 // pred_fallthru
        _
    $region6: #{tpu_custom_call.1} parent=1 // loop_footer
      %s20 = sadd.s32 1, %s16
    $region7: #{tpu_custom_call.1} parent=1 // loop_footer_branch
      %15 = sbr.rel target = $region3
    $region8: #{tpu_custom_call.1} parent=1 // loop_exit
      _
    %401 = vsyncpa [#allocation3], 1
    %s402 = scalar_lea.sflag [#allocation3], 1
    %403 = vsyncpa %s402, 1
    %404 = vsyncpa [#allocation6], 1
    %405 = vsyncpa [#allocation4], 1
    %s406 = scalar_lea.sflag [#allocation4], 1
    %407 = vsyncpa %s406, 1

</llo_original>
